<compile_context>
chip_gen: v5e
topology: v5e:2x2
jax: 0.10.0
libtpu: 0.0.40
codegen_flags: <defaults>
</compile_context>

<pallas_src>
import functools

import jax
import jax.numpy as jnp
from jax.experimental import pallas as pl
from jax.experimental.pallas import tpu as pltpu


# ---------------------------------------------------------------------------
# Pallas kernel 1: single-shot GEMM with fused bias + activation.
# K is taken whole (no reduction grid axis, no accumulator scratch); each
# output tile is written exactly once.
# ---------------------------------------------------------------------------
def _gemm_bias_act_kernel(a_ref, b_ref, bias_ref, o_ref, *, act):
    r = jnp.dot(a_ref[...], b_ref[...], preferred_element_type=jnp.float32)
    r = r + bias_ref[...]                  # (tm,tn) + (1,tn) broadcast, f32 epilogue
    if act == "relu":
        r = jnp.maximum(r, 0.0)
    elif act == "sigmoid":
        r = jax.nn.sigmoid(r)
    o_ref[...] = r.astype(o_ref.dtype)


def _pick_tile(dim, max_tile, align):
    """Full-dim block when small (exempt from the (8,128) rule); otherwise the
    largest multiple of `align` <= max_tile that divides dim exactly."""
    if dim <= max_tile:
        return dim
    t = (max_tile // align) * align
    while t >= align:
        if dim % t == 0:
            return t
        t -= align
    return dim  # fall back to full dim


def matmul_fused(a, b, bias2d, act="none", out_dtype=jnp.bfloat16,
                 tm_max=512, tn_max=512):
    """act(a @ b + bias).  a:(M,K) bf16, b:(K,N) bf16, bias2d:(1,N) f32.
    No padding: blocks are either the full dims or exact divisors."""
    M, K = a.shape
    K2, N = b.shape
    assert K == K2 and bias2d.shape == (1, N)

    tm = _pick_tile(M, tm_max, 8)
    tn = _pick_tile(N, tn_max, 128)
    grid = (M // tm, N // tn)

    return pl.pallas_call(
        functools.partial(_gemm_bias_act_kernel, act=act),
        out_shape=jax.ShapeDtypeStruct((M, N), out_dtype),
        grid=grid,
        in_specs=[
            pl.BlockSpec((tm, K), lambda i, j: (i, 0)),
            pl.BlockSpec((K, tn), lambda i, j: (0, j)),
            pl.BlockSpec((1, tn), lambda i, j: (0, j)),
        ],
        out_specs=pl.BlockSpec((tm, tn), lambda i, j: (i, j)),
        compiler_params=pltpu.CompilerParams(
            dimension_semantics=("parallel", "parallel")),
    )(a, b, bias2d)


# ---------------------------------------------------------------------------
# Pallas kernel 2: final 1x1 conv + sigmoid, computed transposed so the output
# is channel-major with a lane-dense H*W last dim (no masked stores, no
# NHWC->NCHW transpose afterwards).
# ---------------------------------------------------------------------------
def _conv1x1_sigmoid_kernel(x_ref, w_ref, bias_ref, o_ref):
    # x_ref: (1, HW, Cin)   w_ref: (C, Cin)   bias_ref: (C, 1)   o_ref: (1, C, HW)
    r = jax.lax.dot_general(
        w_ref[...], x_ref[0],
        dimension_numbers=(((1,), (1,)), ((), ())),   # contract Cin of both
        preferred_element_type=jnp.float32)           # -> (C, HW), lane-dense
    r = jax.nn.sigmoid(r + bias_ref[...])
    o_ref[0] = r.astype(o_ref.dtype)


def conv1x1_sigmoid_nchw(x_nhwc, w_t, bias_c1):
    """x_nhwc:(N,H,W,Cin) bf16, w_t:(C,Cin) bf16, bias_c1:(C,1) f32 ->
    (N,C,H,W) f32, one grid step per batch element."""
    Nb, H, W, Cin = x_nhwc.shape
    C = w_t.shape[0]
    HW = H * W
    x2 = x_nhwc.reshape(Nb, HW, Cin)   # free row-major reshape
    out = pl.pallas_call(
        _conv1x1_sigmoid_kernel,
        out_shape=jax.ShapeDtypeStruct((Nb, C, HW), jnp.float32),
        grid=(Nb,),
        in_specs=[
            pl.BlockSpec((1, HW, Cin), lambda n: (n, 0, 0)),
            pl.BlockSpec((C, Cin), lambda n: (0, 0)),
            pl.BlockSpec((C, 1), lambda n: (0, 0)),
        ],
        out_specs=pl.BlockSpec((1, C, HW), lambda n: (n, 0, 0)),
        compiler_params=pltpu.CompilerParams(
            dimension_semantics=("parallel",)),
    )(x2, w_t, bias_c1)
    return out.reshape(Nb, C, H, W)    # free reshape, already NCHW


# ---------------------------------------------------------------------------
# Generator (Decoder) parameters + forward
# ---------------------------------------------------------------------------
def _flatten_arch(arch):
    """Accept [(0,128),[(0,256)]]-style nesting; return flat list of filter counts."""
    out = []
    for item in arch:
        if isinstance(item, list):
            out.extend(f for _, f in item)
        else:
            out.append(item[1])
    return out


def init_generator_params(key, latent_dim, target_shape, generator_architecture):
    C, H, W = target_shape
    filters = _flatten_arch(generator_architecture)
    nb = len(filters)
    H0, W0 = H // (2 ** nb), W // (2 ** nb)
    assert H0 >= 1 and W0 >= 1

    params = {}

    def nxt():
        nonlocal key
        key, sub = jax.random.split(key)
        return sub

    scale = 0.05
    # Weights pre-cast to bf16, biases pre-broadcast to (1, N): nothing is
    # padded or re-cast in the jitted forward path.
    n0 = H0 * W0 * filters[0]
    params["dense_w"] = (scale * jax.random.normal(
        nxt(), (latent_dim, n0), jnp.float32)).astype(jnp.bfloat16)
    params["dense_b"] = jnp.zeros((1, n0), jnp.float32)

    chans = filters[0]
    for i, f in enumerate(filters):
        # ConvTranspose2d(chans, f, kernel=2, stride=2) weight (Cin,Cout,2,2),
        # flattened to (Cin, Cout*4) with column order (co, a, b).
        params[f"convT{i}_w"] = (scale * jax.random.normal(
            nxt(), (chans, f * 4), jnp.float32)).astype(jnp.bfloat16)
        # one bias per co, already repeated over the 4 (a,b) columns
        params[f"convT{i}_b"] = jnp.zeros((1, f * 4), jnp.float32)
        chans = f

    # Final 1x1 conv stored transposed: (C, Cin); bias as column (C, 1).
    params["out_w_t"] = (scale * jax.random.normal(
        nxt(), (C, chans), jnp.float32)).astype(jnp.bfloat16)
    params["out_b"] = jnp.zeros((C, 1), jnp.float32)
    return params


def generator_forward(params, z, target_shape, generator_architecture):
    """z: (N, latent_dim) -> images (N, C, H, W)  [NCHW, PyTorch convention]."""
    C, H, W = target_shape
    filters = _flatten_arch(generator_architecture)
    nb = len(filters)
    H0, W0 = H // (2 ** nb), W // (2 ** nb)
    N = z.shape[0]

    # Dense + ReLU (Pallas GEMM, bf16 operands, f32 epilogue)
    x = matmul_fused(z.astype(jnp.bfloat16), params["dense_w"],
                     params["dense_b"], act="relu")
    x = x.reshape(N, H0, W0, filters[0])  # NHWC, bf16

    h, w, chans = H0, W0, filters[0]
    for i, f in enumerate(filters):
        m = x.reshape(N * h * w, chans)
        y = matmul_fused(m, params[f"convT{i}_w"], params[f"convT{i}_b"],
                         act="relu")
        # stride-2 pixel-shuffle scatter (pure layout glue on a tiny bf16 tensor)
        # (N,h,w,co,a,b) -> (N,h,a,w,b,co) -> (N,2h,2w,co)
        y = y.reshape(N, h, w, f, 2, 2).transpose(0, 1, 4, 2, 5, 3)
        x = y.reshape(N, 2 * h, 2 * w, f)
        h, w, chans = 2 * h, 2 * w, f

    # Final 1x1 conv + sigmoid, lane-dense channel-major output -> NCHW directly
    return conv1x1_sigmoid_nchw(x, params["out_w_t"], params["out_b"])


# ---------------------------------------------------------------------------
# GAN.forward(z) == generator_forward(z)
# ---------------------------------------------------------------------------
def gan_forward(params, z, target_shape, generator_architecture):
    return generator_forward(params, z, target_shape, generator_architecture)


if __name__ == "__main__":
    target_shape = (4, 16, 16)                     # (C, H, W)
    latent_dim = 32
    generator_architecture = [(0, 32), (0, 64)]    # two stride-2 upsample blocks
    batch = 2

    key = jax.random.PRNGKey(0)
    pkey, zkey = jax.random.split(key)
    params = init_generator_params(pkey, latent_dim, target_shape,
                                   generator_architecture)
    z = jax.random.normal(zkey, (batch, latent_dim), jnp.float32)

    out = jax.jit(
        lambda p, z_: gan_forward(p, z_, target_shape, generator_architecture)
    )(params, z)
    out = jax.block_until_ready(out)

    assert out.shape == (batch,) + target_shape, out.shape
    assert bool(jnp.all(jnp.isfinite(out)))
    assert bool(jnp.all((out >= 0.0) & (out <= 1.0)))  # sigmoid output range
    print("KERNEL_OK")
</pallas_src>

<mosaic_0001>
module attributes {stable_mosaic.version = 11 : i64} {
  func.func @_gemm_bias_act_kernel(%arg0: i32, %arg1: i32, %arg2: memref<2x32xbf16, #tpu.memory_space<vmem>>, %arg3: memref<32x512xbf16, #tpu.memory_space<vmem>>, %arg4: memref<1x512xf32, #tpu.memory_space<vmem>>, %arg5: memref<2x512xbf16, #tpu.memory_space<vmem>>) attributes {dimension_semantics = [#tpu.dimension_semantics<parallel>, #tpu.dimension_semantics<parallel>], iteration_bounds = array<i64: 1, 1>, scalar_prefetch = 0 : i64, scratch_operands = 0 : i64, tpu.core_type = #tpu.core_type<tc>, window_params = [{transform_indices = @transform_0, window_bounds = array<i64: 2, 32>}, {transform_indices = @transform_1, window_bounds = array<i64: 32, 512>}, {transform_indices = @transform_2, window_bounds = array<i64: 1, 512>}, {transform_indices = @transform_3, window_bounds = array<i64: 2, 512>}]} {
    %c0 = arith.constant 0 : index
    %c0_0 = arith.constant 0 : index
    %0 = vector.load %arg2[%c0, %c0_0] : memref<2x32xbf16, #tpu.memory_space<vmem>>, vector<2x32xbf16>
    %c0_1 = arith.constant 0 : index
    %c0_2 = arith.constant 0 : index
    %1 = vector.load %arg3[%c0_1, %c0_2] : memref<32x512xbf16, #tpu.memory_space<vmem>>, vector<32x512xbf16>
    %cst = arith.constant dense<0.000000e+00> : vector<2x512xf32>
    %2 = tpu.matmul %0, %1, %cst {dimension_numbers = #tpu.dot_dimension_numbers<[1], [0], [0], [1], [0, 0, 1, 1], [], []>} : vector<2x32xbf16>, vector<32x512xbf16>, vector<2x512xf32> -> vector<2x512xf32>
    %c0_3 = arith.constant 0 : index
    %c0_4 = arith.constant 0 : index
    %3 = vector.load %arg4[%c0_3, %c0_4] : memref<1x512xf32, #tpu.memory_space<vmem>>, vector<1x512xf32>
    %4 = vector.broadcast %3 : vector<1x512xf32> to vector<2x512xf32>
    %5 = arith.addf %2, %4 : vector<2x512xf32>
    %cst_5 = arith.constant 0.000000e+00 : f32
    %6 = vector.broadcast %cst_5 : f32 to vector<2x512xf32>
    %7 = arith.maximumf %5, %6 : vector<2x512xf32>
    %8 = arith.truncf %7 : vector<2x512xf32> to vector<2x512xbf16>
    %c0_6 = arith.constant 0 : index
    %c0_7 = arith.constant 0 : index
    %9 = vector.load %arg5[%c0_6, %c0_7] : memref<2x512xbf16, #tpu.memory_space<vmem>>, vector<2x512xbf16>
    tpu.vector_store %arg5[%c0_6, %c0_7], %8 {strides = array<i32>} : memref<2x512xbf16, #tpu.memory_space<vmem>>, vector<2x512xbf16>,
    return
  }
  func.func @transform_0(%arg0: i32, %arg1: i32) -> (i32, i32) {
    %c0_i32 = arith.constant 0 : i32
    %c0_i32_0 = arith.constant 0 : i32
    return %arg0, %c0_i32 : i32, i32
  }
  func.func @transform_1(%arg0: i32, %arg1: i32) -> (i32, i32) {
    %c0_i32 = arith.constant 0 : i32
    %c0_i32_0 = arith.constant 0 : i32
    return %c0_i32, %arg1 : i32, i32
  }
  func.func @transform_2(%arg0: i32, %arg1: i32) -> (i32, i32) {
    %c0_i32 = arith.constant 0 : i32
    %c0_i32_0 = arith.constant 0 : i32
    return %c0_i32, %arg1 : i32, i32
  }
  func.func @transform_3(%arg0: i32, %arg1: i32) -> (i32, i32) {
    %c0_i32 = arith.constant 0 : i32
    return %arg0, %arg1 : i32, i32
  }
}

module attributes {stable_mosaic.version = 11 : i64} {
  func.func @_gemm_bias_act_kernel(%arg0: i32, %arg1: i32, %arg2: memref<32x32xbf16, #tpu.memory_space<vmem>>, %arg3: memref<32x128xbf16, #tpu.memory_space<vmem>>, %arg4: memref<1x128xf32, #tpu.memory_space<vmem>>, %arg5: memref<32x128xbf16, #tpu.memory_space<vmem>>) attributes {dimension_semantics = [#tpu.dimension_semantics<parallel>, #tpu.dimension_semantics<parallel>], iteration_bounds = array<i64: 1, 1>, scalar_prefetch = 0 : i64, scratch_operands = 0 : i64, tpu.core_type = #tpu.core_type<tc>, window_params = [{transform_indices = @transform_0, window_bounds = array<i64: 32, 32>}, {transform_indices = @transform_1, window_bounds = array<i64: 32, 128>}, {transform_indices = @transform_2, window_bounds = array<i64: 1, 128>}, {transform_indices = @transform_3, window_bounds = array<i64: 32, 128>}]} {
    %c0 = arith.constant 0 : index
    %c0_0 = arith.constant 0 : index
    %0 = vector.load %arg2[%c0, %c0_0] : memref<32x32xbf16, #tpu.memory_space<vmem>>, vector<32x32xbf16>
    %c0_1 = arith.constant 0 : index
    %c0_2 = arith.constant 0 : index
    %1 = vector.load %arg3[%c0_1, %c0_2] : memref<32x128xbf16, #tpu.memory_space<vmem>>, vector<32x128xbf16>
    %cst = arith.constant dense<0.000000e+00> : vector<32x128xf32>
    %2 = tpu.matmul %0, %1, %cst {dimension_numbers = #tpu.dot_dimension_numbers<[1], [0], [0], [1], [0, 0, 1, 1], [], []>} : vector<32x32xbf16>, vector<32x128xbf16>, vector<32x128xf32> -> vector<32x128xf32>
    %c0_3 = arith.constant 0 : index
    %c0_4 = arith.constant 0 : index
    %3 = vector.load %arg4[%c0_3, %c0_4] : memref<1x128xf32, #tpu.memory_space<vmem>>, vector<1x128xf32>
    %4 = vector.broadcast %3 : vector<1x128xf32> to vector<32x128xf32>
    %5 = arith.addf %2, %4 : vector<32x128xf32>
    %cst_5 = arith.constant 0.000000e+00 : f32
    %6 = vector.broadcast %cst_5 : f32 to vector<32x128xf32>
    %7 = arith.maximumf %5, %6 : vector<32x128xf32>
    %8 = arith.truncf %7 : vector<32x128xf32> to vector<32x128xbf16>
    %c0_6 = arith.constant 0 : index
    %c0_7 = arith.constant 0 : index
    %9 = vector.load %arg5[%c0_6, %c0_7] : memref<32x128xbf16, #tpu.memory_space<vmem>>, vector<32x128xbf16>
    tpu.vector_store %arg5[%c0_6, %c0_7], %8 {strides = array<i32>} : memref<32x128xbf16, #tpu.memory_space<vmem>>, vector<32x128xbf16>,
    return
  }
  func.func @transform_0(%arg0: i32, %arg1: i32) -> (i32, i32) {
    %c0_i32 = arith.constant 0 : i32
    %c0_i32_0 = arith.constant 0 : i32
    return %arg0, %c0_i32 : i32, i32
  }
  func.func @transform_1(%arg0: i32, %arg1: i32) -> (i32, i32) {
    %c0_i32 = arith.constant 0 : i32
    %c0_i32_0 = arith.constant 0 : i32
    return %c0_i32, %arg1 : i32, i32
  }
  func.func @transform_2(%arg0: i32, %arg1: i32) -> (i32, i32) {
    %c0_i32 = arith.constant 0 : i32
    %c0_i32_0 = arith.constant 0 : i32
    return %c0_i32, %arg1 : i32, i32
  }
  func.func @transform_3(%arg0: i32, %arg1: i32) -> (i32, i32) {
    %c0_i32 = arith.constant 0 : i32
    return %arg0, %arg1 : i32, i32
  }
}

module attributes {stable_mosaic.version = 11 : i64} {
  func.func @_gemm_bias_act_kernel(%arg0: i32, %arg1: i32, %arg2: memref<128x32xbf16, #tpu.memory_space<vmem>>, %arg3: memref<32x256xbf16, #tpu.memory_space<vmem>>, %arg4: memref<1x256xf32, #tpu.memory_space<vmem>>, %arg5: memref<128x256xbf16, #tpu.memory_space<vmem>>) attributes {dimension_semantics = [#tpu.dimension_semantics<parallel>, #tpu.dimension_semantics<parallel>], iteration_bounds = array<i64: 1, 1>, scalar_prefetch = 0 : i64, scratch_operands = 0 : i64, tpu.core_type = #tpu.core_type<tc>, window_params = [{transform_indices = @transform_0, window_bounds = array<i64: 128, 32>}, {transform_indices = @transform_1, window_bounds = array<i64: 32, 256>}, {transform_indices = @transform_2, window_bounds = array<i64: 1, 256>}, {transform_indices = @transform_3, window_bounds = array<i64: 128, 256>}]} {
    %c0 = arith.constant 0 : index
    %c0_0 = arith.constant 0 : index
    %0 = vector.load %arg2[%c0, %c0_0] : memref<128x32xbf16, #tpu.memory_space<vmem>>, vector<128x32xbf16>
    %c0_1 = arith.constant 0 : index
    %c0_2 = arith.constant 0 : index
    %1 = vector.load %arg3[%c0_1, %c0_2] : memref<32x256xbf16, #tpu.memory_space<vmem>>, vector<32x256xbf16>
    %cst = arith.constant dense<0.000000e+00> : vector<128x256xf32>
    %2 = tpu.matmul %0, %1, %cst {dimension_numbers = #tpu.dot_dimension_numbers<[1], [0], [0], [1], [0, 0, 1, 1], [], []>} : vector<128x32xbf16>, vector<32x256xbf16>, vector<128x256xf32> -> vector<128x256xf32>
    %c0_3 = arith.constant 0 : index
    %c0_4 = arith.constant 0 : index
    %3 = vector.load %arg4[%c0_3, %c0_4] : memref<1x256xf32, #tpu.memory_space<vmem>>, vector<1x256xf32>
    %4 = vector.broadcast %3 : vector<1x256xf32> to vector<128x256xf32>
    %5 = arith.addf %2, %4 : vector<128x256xf32>
    %cst_5 = arith.constant 0.000000e+00 : f32
    %6 = vector.broadcast %cst_5 : f32 to vector<128x256xf32>
    %7 = arith.maximumf %5, %6 : vector<128x256xf32>
    %8 = arith.truncf %7 : vector<128x256xf32> to vector<128x256xbf16>
    %c0_6 = arith.constant 0 : index
    %c0_7 = arith.constant 0 : index
    %9 = vector.load %arg5[%c0_6, %c0_7] : memref<128x256xbf16, #tpu.memory_space<vmem>>, vector<128x256xbf16>
    tpu.vector_store %arg5[%c0_6, %c0_7], %8 {strides = array<i32>} : memref<128x256xbf16, #tpu.memory_space<vmem>>, vector<128x256xbf16>,
    return
  }
  func.func @transform_0(%arg0: i32, %arg1: i32) -> (i32, i32) {
    %c0_i32 = arith.constant 0 : i32
    %c0_i32_0 = arith.constant 0 : i32
    return %arg0, %c0_i32 : i32, i32
  }
  func.func @transform_1(%arg0: i32, %arg1: i32) -> (i32, i32) {
    %c0_i32 = arith.constant 0 : i32
    %c0_i32_0 = arith.constant 0 : i32
    return %c0_i32, %arg1 : i32, i32
  }
  func.func @transform_2(%arg0: i32, %arg1: i32) -> (i32, i32) {
    %c0_i32 = arith.constant 0 : i32
    %c0_i32_0 = arith.constant 0 : i32
    return %c0_i32, %arg1 : i32, i32
  }
  func.func @transform_3(%arg0: i32, %arg1: i32) -> (i32, i32) {
    %c0_i32 = arith.constant 0 : i32
    return %arg0, %arg1 : i32, i32
  }
}

module attributes {stable_mosaic.version = 11 : i64} {
  func.func @_conv1x1_sigmoid_kernel(%arg0: i32, %arg1: memref<1x256x64xbf16, #tpu.memory_space<vmem>>, %arg2: memref<4x64xbf16, #tpu.memory_space<vmem>>, %arg3: memref<4x1xf32, #tpu.memory_space<vmem>>, %arg4: memref<1x4x256xf32, #tpu.memory_space<vmem>>) attributes {dimension_semantics = [#tpu.dimension_semantics<parallel>], iteration_bounds = array<i64: 2>, scalar_prefetch = 0 : i64, scratch_operands = 0 : i64, tpu.core_type = #tpu.core_type<tc>, window_params = [{transform_indices = @transform_0, window_bounds = array<i64: 1, 256, 64>}, {pipeline_mode = #tpu.pipeline_mode<synchronous>, transform_indices = @transform_1, window_bounds = array<i64: 4, 64>}, {pipeline_mode = #tpu.pipeline_mode<synchronous>, transform_indices = @transform_2, window_bounds = array<i64: 4, 1>}, {transform_indices = @transform_3, window_bounds = array<i64: 1, 4, 256>}]} {
    %c0 = arith.constant 0 : index
    %c0_0 = arith.constant 0 : index
    %0 = vector.load %arg2[%c0, %c0_0] : memref<4x64xbf16, #tpu.memory_space<vmem>>, vector<4x64xbf16>
    %c0_1 = arith.constant 0 : index
    %c0_2 = arith.constant 0 : index
    %c0_3 = arith.constant 0 : index
    %1 = vector.load %arg1[%c0_1, %c0_2, %c0_3] : memref<1x256x64xbf16, #tpu.memory_space<vmem>>, vector<1x256x64xbf16>
    %2 = vector.shape_cast %1 : vector<1x256x64xbf16> to vector<256x64xbf16>
    %cst = arith.constant dense<0.000000e+00> : vector<4x256xf32>
    %3 = tpu.matmul %0, %2, %cst {dimension_numbers = #tpu.dot_dimension_numbers<[1], [1], [0], [0], [0, 0, 1, 0], [], []>} : vector<4x64xbf16>, vector<256x64xbf16>, vector<4x256xf32> -> vector<4x256xf32>
    %c0_4 = arith.constant 0 : index
    %c0_5 = arith.constant 0 : index
    %4 = vector.load %arg3[%c0_4, %c0_5] : memref<4x1xf32, #tpu.memory_space<vmem>>, vector<4x1xf32>
    %5 = vector.broadcast %4 : vector<4x1xf32> to vector<4x256xf32>
    %6 = arith.addf %3, %5 : vector<4x256xf32>
    %7 = arith.negf %6 : vector<4x256xf32>
    %8 = math.exp %7 : vector<4x256xf32>
    %cst_6 = arith.constant 1.000000e+00 : f32
    %9 = vector.broadcast %cst_6 : f32 to vector<4x256xf32>
    %10 = arith.addf %9, %8 : vector<4x256xf32>
    %11 = arith.divf %9, %10 : vector<4x256xf32>
    %c0_7 = arith.constant 0 : index
    %c0_8 = arith.constant 0 : index
    %c0_9 = arith.constant 0 : index
    %12 = vector.load %arg4[%c0_7, %c0_8, %c0_9] : memref<1x4x256xf32, #tpu.memory_space<vmem>>, vector<1x4x256xf32>
    %13 = vector.shape_cast %12 : vector<1x4x256xf32> to vector<4x256xf32>
    %14 = vector.shape_cast %11 : vector<4x256xf32> to vector<1x4x256xf32>
    tpu.vector_store %arg4[%c0_7, %c0_8, %c0_9], %14 {strides = array<i32>} : memref<1x4x256xf32, #tpu.memory_space<vmem>>, vector<1x4x256xf32>,
    return
  }
  func.func @transform_0(%arg0: i32) -> (i32, i32, i32) {
    %c0_i32 = arith.constant 0 : i32
    %c0_i32_0 = arith.constant 0 : i32
    %c0_i32_1 = arith.constant 0 : i32
    return %arg0, %c0_i32, %c0_i32_0 : i32, i32, i32
  }
  func.func @transform_1(%arg0: i32) -> (i32, i32) {
    %c0_i32 = arith.constant 0 : i32
    %c0_i32_0 = arith.constant 0 : i32
    %c0_i32_1 = arith.constant 0 : i32
    return %c0_i32, %c0_i32_0 : i32, i32
  }
  func.func @transform_2(%arg0: i32) -> (i32, i32) {
    %c0_i32 = arith.constant 0 : i32
    %c0_i32_0 = arith.constant 0 : i32
    %c0_i32_1 = arith.constant 0 : i32
    return %c0_i32, %c0_i32_0 : i32, i32
  }
  func.func @transform_3(%arg0: i32) -> (i32, i32, i32) {
    %c0_i32 = arith.constant 0 : i32
    %c0_i32_0 = arith.constant 0 : i32
    %c0_i32_1 = arith.constant 0 : i32
    return %arg0, %c0_i32, %c0_i32_0 : i32, i32, i32
  }
}

</mosaic_0001>

<llo_original>
// kernel: _lambda_.4
$region0: #{_lambda_.4}
  #allocation0 [shape = 'u32[]', space=smem, size = 0x4, offset = 0x4, fixed_abs, tag = 'smem constant byte address 0x4 - core index']
  #allocation1 [shape = 'u32[72,128]{1,0:T(1,128)}', space=vmem, size = 0x9000, scoped, tag = 'internal scratch']
  %s0 = inlined_call_operand.vmem [shape: bf16[2,32], index: 0, kind: input, shape index: {}]
  %s1 = inlined_call_operand.hbm [shape: bf16[32,512], index: 1, kind: input, shape index: {}]
  %s2 = inlined_call_operand.vmem [shape: f32[1,512], index: 2, kind: input, shape index: {}]
  %s3 = inlined_call_operand.vmem [shape: bf16[2,512], index: 3, kind: output, shape index: {}]
  %s4 = sld [smem:[#allocation0]]
  $region26: #{_lambda_.4} parent=0
    _
  %s6 = ssub.s32 1, %s4
  %s7 = scalar_select 0, %s6, %s4
  $region1: #{_lambda_.4} parent=0
    #allocation2 [shape = 'u8[32768]{0}', space=vmem, size = 0x8000, scoped, tag = 'input window, operand 1, single buffered']
    #allocation3 [shape = 's32[1]{0}', space=sflag, size = 0x4, scoped, tag = 'scoped memory for _lambda_.4']
    %8 = vsyncpa [#allocation3], 0
    // Predicated region
    $region2: #{_lambda_.4} parent=1 // pred_check
      _
    $region3: #{_lambda_.4} parent=1 // pred_check_branch
      %10 = sbr.rel (0) target = $region5
    $region4: #{_lambda_.4} parent=1 // pred_region
      _
    $region5: #{_lambda_.4} parent=1 // pred_fallthru
      _
    // Predicated region
    $region6: #{_lambda_.4} parent=1 // pred_check
      _
    $region7: #{_lambda_.4} parent=1 // pred_check_branch
      %12 = sbr.rel (0) target = $region9
    $region8: #{_lambda_.4} parent=1 // pred_region
      %14 = vsyncadd [#allocation3], 0
      %s15 = sshll.u32 %s1, 4
      %s16 = int_to_ptr.hbm [resolvable:$true] %s15
      %s17 = sshll.u32 [#allocation2], 4
      %s18 = int_to_ptr.vmem [resolvable:$true] %s17
      %23 = dma.hbm_to_vmem [thread:$0]  %s16, 1024, %s18, [#allocation3], 256, 256, 16
    $region9: #{_lambda_.4} parent=1 // pred_fallthru
      _
    // Predicated region
    $region10: #{_lambda_.4} parent=1 // pred_check
      _
    $region11: #{_lambda_.4} parent=1 // pred_check_branch
      %25 = sbr.rel (0) target = $region13
    $region12: #{_lambda_.4} parent=1 // pred_region
      _
    $region13: #{_lambda_.4} parent=1 // pred_fallthru
      _
    // Predicated region
    $region14: #{_lambda_.4} parent=1 // pred_check
      _
    $region15: #{_lambda_.4} parent=1 // pred_check_branch
      %27 = sbr.rel (0) target = $region17
    $region16: #{_lambda_.4} parent=1 // pred_region
      %29 = dma.done [#allocation3], 1024
    $region17: #{_lambda_.4} parent=1 // pred_fallthru
      _
    %v31 = vld [vmem:[%s0] sm:$0x1]
    %v32 = vld [vmem:[#allocation2] sm:$0xff]
    %v33 = vld [vmem:[#allocation2 + $0x8] sm:$0xff]
    %v34 = vld [vmem:[#allocation2 + $0x10] sm:$0xff]
    %v35 = vld [vmem:[#allocation2 + $0x18] sm:$0xff]
    %v36 = vld [vmem:[#allocation2 + $0x20] sm:$0xff]
    %v37 = vld [vmem:[#allocation2 + $0x28] sm:$0xff]
    %v38 = vld [vmem:[#allocation2 + $0x30] sm:$0xff]
    %v39 = vld [vmem:[#allocation2 + $0x38] sm:$0xff]
    %v40 = vld [vmem:[%s2] sm:$0xf]
    %v42 = vperm.slane %v40, 0
    %v43 = vperm.slane %v40, 1
    %v44 = vperm.slane %v40, 2
    %v45 = vperm.slane %v40, 3
    %v58 = vunpack.c.l.b16 %v32
    %v59 = vunpack.c.h.b16 %v32
    %v60 = vunpack.c.l.b16 %v33
    %v61 = vunpack.c.h.b16 %v33
    %v62 = vunpack.c.l.b16 %v34
    %v63 = vunpack.c.h.b16 %v34
    %v64 = vunpack.c.l.b16 %v35
    %v65 = vunpack.c.h.b16 %v35
    %v66 = vunpack.c.l.b16 %v36
    %v67 = vunpack.c.h.b16 %v36
    %v68 = vunpack.c.l.b16 %v37
    %v69 = vunpack.c.h.b16 %v37
    %v70 = vunpack.c.l.b16 %v38
    %v71 = vunpack.c.h.b16 %v38
    %v72 = vunpack.c.l.b16 %v39
    %v73 = vunpack.c.h.b16 %v39
    %v74 = vpack.c.b16 %v62, %v58
    %v75 = vpack.c.b16 %v63, %v59
    %v76 = vpack.c.b16 %v64, %v60
    %v77 = vpack.c.b16 %v65, %v61
    %v78 = vpack.c.b16 %v70, %v66
    %v79 = vpack.c.b16 %v71, %v67
    %v80 = vpack.c.b16 %v72, %v68
    %v81 = vpack.c.b16 %v73, %v69
    %vm90 = vcmask 261120
    %v92 = vsel %vm90, %v31, 0
    %94 = vmatpush.bf16.msra.mxu0 0
    %95 = vmatpush.bf16.msra.mxu0 0
    %96 = vmatpush.bf16.msra.mxu0 0
    %97 = vmatpush.bf16.msra.mxu0 0
    %98 = vmatpush.bf16.msra.mxu0 0
    %99 = vmatpush.bf16.msra.mxu0 0
    %100 = vmatpush.bf16.msra.mxu0 %v78
    %101 = vmatpush.bf16.msra.mxu0 %v74
    %102 = vmatmul.bf16.gmra.mxu0 %v92
    %v103 = vpop.f32.mrf.mxu0
    %v104 = vadd.f32 %v42, %v103
    %v105 = vpop.f32.mrf.mxu0
    %106 = vdwg.mxu0
    %107 = vmatpush.bf16.msra.mxu0 0
    %108 = vmatpush.bf16.msra.mxu0 0
    %109 = vmatpush.bf16.msra.mxu0 0
    %110 = vmatpush.bf16.msra.mxu0 0
    %111 = vmatpush.bf16.msra.mxu0 0
    %112 = vmatpush.bf16.msra.mxu0 0
    %113 = vmatpush.bf16.msra.mxu0 %v79
    %114 = vmatpush.bf16.msra.mxu0 %v75
    %115 = vmatmul.bf16.gmra.mxu0 %v92
    %v116 = vpop.f32.mrf.mxu0
    %v117 = vadd.f32 %v43, %v116
    %v118 = vpop.f32.mrf.mxu0
    %119 = vdwg.mxu0
    %120 = vmatpush.bf16.msra.mxu0 0
    %121 = vmatpush.bf16.msra.mxu0 0
    %122 = vmatpush.bf16.msra.mxu0 0
    %123 = vmatpush.bf16.msra.mxu0 0
    %124 = vmatpush.bf16.msra.mxu0 0
    %125 = vmatpush.bf16.msra.mxu0 0
    %126 = vmatpush.bf16.msra.mxu0 %v80
    %127 = vmatpush.bf16.msra.mxu0 %v76
    %128 = vmatmul.bf16.gmra.mxu0 %v92
    %v129 = vpop.f32.mrf.mxu0
    %v130 = vadd.f32 %v44, %v129
    %v131 = vpop.f32.mrf.mxu0
    %132 = vdwg.mxu0
    %133 = vmatpush.bf16.msra.mxu0 0
    %134 = vmatpush.bf16.msra.mxu0 0
    %135 = vmatpush.bf16.msra.mxu0 0
    %136 = vmatpush.bf16.msra.mxu0 0
    %137 = vmatpush.bf16.msra.mxu0 0
    %138 = vmatpush.bf16.msra.mxu0 0
    %139 = vmatpush.bf16.msra.mxu0 %v81
    %140 = vmatpush.bf16.msra.mxu0 %v77
    %141 = vmatmul.bf16.gmra.mxu0 %v92
    %v142 = vpop.f32.mrf.mxu0
    %v143 = vadd.f32 %v45, %v142
    %v144 = vpop.f32.mrf.mxu0
    %145 = vdwg.mxu0
    %v146 = vmax.f32 %v104, 0.0
    %v147 = vmax.f32 %v117, 0.0
    %v148 = vmax.f32 %v130, 0.0
    %v149 = vmax.f32 %v143, 0.0
    %v150 = vpack.c.bf16 %v147, %v146
    %v151 = vpack.c.bf16 %v149, %v148
    %v154 = vrot.slane %v150, 3
    %v155 = vrot.slane %v151, 6
    %v156 = vrot.slane %v151, 1
    %vm157 = vcmask 1040384
    %v160 = vsel %vm157, %v150, %v154
    %vm161 = vcmask 1042434
    %v164 = vsel %vm161, %v155, %v156
    %vm165 = vcmask 1041408
    %v166 = vsel %vm165, %v160, %v164
    %168 = vst [vmem:[%s3] sm:$0xf] %v166
    // Predicated region
    $region18: #{_lambda_.4} parent=1 // pred_check
      _
    $region19: #{_lambda_.4} parent=1 // pred_check_branch
      %170 = sbr.rel (0) target = $region21
    $region20: #{_lambda_.4} parent=1 // pred_region
      _
    $region21: #{_lambda_.4} parent=1 // pred_fallthru
      _
    // Predicated region
    $region22: #{_lambda_.4} parent=1 // pred_check
      _
    $region23: #{_lambda_.4} parent=1 // pred_check_branch
      %172 = sbr.rel (0) target = $region25
    $region24: #{_lambda_.4} parent=1 // pred_region
      _
    $region25: #{_lambda_.4} parent=1 // pred_fallthru
      _
    %173 = vsyncpa [#allocation3], 1

// kernel: _lambda_.5
$region0: #{_lambda_.5}
  #allocation0 [shape = 'u32[]', space=smem, size = 0x4, offset = 0x4, fixed_abs, tag = 'smem constant byte address 0x4 - core index']
  #allocation1 [shape = 'u32[72,128]{1,0:T(1,128)}', space=vmem, size = 0x9000, scoped, tag = 'internal scratch']
  %s0 = inlined_call_operand.vmem [shape: bf16[32,32], index: 0, kind: input, shape index: {}]
  %s1 = inlined_call_operand.vmem [shape: bf16[32,128], index: 1, kind: input, shape index: {}]
  %s2 = inlined_call_operand.vmem [shape: f32[1,128], index: 2, kind: input, shape index: {}]
  %s3 = inlined_call_operand.vmem [shape: bf16[32,128], index: 3, kind: output, shape index: {}]
  %s4 = sld [smem:[#allocation0]]
  $region22: #{_lambda_.5} parent=0
    _
  %s6 = ssub.s32 1, %s4
  %s7 = scalar_select 0, %s6, %s4
  // Predicated region
  $region2: #{_lambda_.5} parent=0 // pred_check
    _
  $region3: #{_lambda_.5} parent=0 // pred_check_branch
    %9 = sbr.rel (0) target = $region5
  $region4: #{_lambda_.5} parent=0 // pred_region
    _
  $region5: #{_lambda_.5} parent=0 // pred_fallthru
    _
  // Predicated region
  $region6: #{_lambda_.5} parent=0 // pred_check
    _
  $region7: #{_lambda_.5} parent=0 // pred_check_branch
    %11 = sbr.rel (0) target = $region9
  $region8: #{_lambda_.5} parent=0 // pred_region
    _
  $region9: #{_lambda_.5} parent=0 // pred_fallthru
    _
  // Predicated region
  $region10: #{_lambda_.5} parent=0 // pred_check
    _
  $region11: #{_lambda_.5} parent=0 // pred_check_branch
    %13 = sbr.rel (0) target = $region13
  $region12: #{_lambda_.5} parent=0 // pred_region
    _
  $region13: #{_lambda_.5} parent=0 // pred_fallthru
    _
  %v15 = vld [vmem:[%s0] sm:$0xf]
  %v16 = vld [vmem:[%s0 + $0x4] sm:$0xf]
  %v17 = vld [vmem:[%s0 + $0x8] sm:$0xf]
  %v18 = vld [vmem:[%s0 + $0xc] sm:$0xf]
  %v19 = vld [vmem:[%s1] sm:$0xf]
  %v20 = vld [vmem:[%s1 + $0x4] sm:$0xf]
  %v21 = vld [vmem:[%s1 + $0x8] sm:$0xf]
  %v22 = vld [vmem:[%s1 + $0xc] sm:$0xf]
  %v23 = vld [vmem:[%s2] sm:$0x1]
  %v25 = vperm.slane %v23, 0
  %v31 = vunpack.c.l.b16 %v15
  %v32 = vunpack.c.l.b16 %v16
  %v33 = vunpack.c.l.b16 %v17
  %v34 = vunpack.c.l.b16 %v18
  %v35 = vpack.c.b16 %v32, %v31
  %v36 = vpack.c.b16 %v34, %v33
  %v41 = vunpack.c.l.b16 %v19
  %v42 = vunpack.c.l.b16 %v20
  %v43 = vunpack.c.l.b16 %v21
  %v44 = vunpack.c.l.b16 %v22
  %v45 = vpack.c.b16 %v42, %v41
  %v46 = vpack.c.b16 %v44, %v43
  %vm49 = vcmask 261120
  %v51 = vsel %vm49, %v35, 0
  %v54 = vsel %vm49, %v36, 0
  %56 = vmatpush.bf16.msra.mxu0 0
  %57 = vmatpush.bf16.msra.mxu0 0
  %58 = vmatpush.bf16.msra.mxu0 0
  %59 = vmatpush.bf16.msra.mxu0 0
  %60 = vmatpush.bf16.msra.mxu0 0
  %61 = vmatpush.bf16.msra.mxu0 0
  %62 = vmatpush.bf16.msra.mxu0 %v46
  %63 = vmatpush.bf16.msra.mxu0 %v45
  %64 = vmatmul.bf16.gmra.mxu0 %v51
  %v65 = vpop.f32.mrf.mxu0
  %v66 = vadd.f32 %v25, %v65
  %v67 = vpop.f32.mrf.mxu0
  %v68 = vadd.f32 %v25, %v67
  %69 = vmatmul.bf16.gmra.mxu0 %v54
  %v70 = vpop.f32.mrf.mxu0
  %v71 = vadd.f32 %v25, %v70
  %v72 = vpop.f32.mrf.mxu0
  %v73 = vadd.f32 %v25, %v72
  %74 = vdwg.mxu0
  %v75 = vmax.f32 %v66, 0.0
  %v76 = vmax.f32 %v68, 0.0
  %v77 = vmax.f32 %v71, 0.0
  %v78 = vmax.f32 %v73, 0.0
  %v79 = vpack.c.bf16 %v75, %v75
  %v80 = vpack.c.bf16 %v76, %v76
  %v81 = vpack.c.bf16 %v77, %v77
  %v82 = vpack.c.bf16 %v78, %v78
  %83 = vst [vmem:[%s3] sm:$0xf] %v79
  %84 = vst [vmem:[%s3 + $0x4] sm:$0xf] %v80
  %85 = vst [vmem:[%s3 + $0x8] sm:$0xf] %v81
  %86 = vst [vmem:[%s3 + $0xc] sm:$0xf] %v82
  // Predicated region
  $region14: #{_lambda_.5} parent=0 // pred_check
    _
  $region15: #{_lambda_.5} parent=0 // pred_check_branch
    %88 = sbr.rel (0) target = $region17
  $region16: #{_lambda_.5} parent=0 // pred_region
    _
  $region17: #{_lambda_.5} parent=0 // pred_fallthru
    _
  // Predicated region
  $region18: #{_lambda_.5} parent=0 // pred_check
    _
  $region19: #{_lambda_.5} parent=0 // pred_check_branch
    %90 = sbr.rel (0) target = $region21
  $region20: #{_lambda_.5} parent=0 // pred_region
    _
  $region21: #{_lambda_.5} parent=0 // pred_fallthru
    _

// kernel: _lambda_.6
$region0: #{_lambda_.6}
  #allocation0 [shape = 'u32[]', space=smem, size = 0x4, offset = 0x4, fixed_abs, tag = 'smem constant byte address 0x4 - core index']
  #allocation1 [shape = 'u32[72,128]{1,0:T(1,128)}', space=vmem, size = 0x9000, scoped, tag = 'internal scratch']
  %s0 = inlined_call_operand.vmem [shape: bf16[128,32], index: 0, kind: input, shape index: {}]
  %s1 = inlined_call_operand.vmem [shape: bf16[32,256], index: 1, kind: input, shape index: {}]
  %s2 = inlined_call_operand.vmem [shape: f32[1,256], index: 2, kind: input, shape index: {}]
  %s3 = inlined_call_operand.vmem [shape: bf16[128,256], index: 3, kind: output, shape index: {}]
  %s4 = sld [smem:[#allocation0]]
  $region22: #{_lambda_.6} parent=0
    _
  %s6 = ssub.s32 1, %s4
  %s7 = scalar_select 0, %s6, %s4
  // Predicated region
  $region2: #{_lambda_.6} parent=0 // pred_check
    _
  $region3: #{_lambda_.6} parent=0 // pred_check_branch
    %9 = sbr.rel (0) target = $region5
  $region4: #{_lambda_.6} parent=0 // pred_region
    _
  $region5: #{_lambda_.6} parent=0 // pred_fallthru
    _
  // Predicated region
  $region6: #{_lambda_.6} parent=0 // pred_check
    _
  $region7: #{_lambda_.6} parent=0 // pred_check_branch
    %11 = sbr.rel (0) target = $region9
  $region8: #{_lambda_.6} parent=0 // pred_region
    _
  $region9: #{_lambda_.6} parent=0 // pred_fallthru
    _
  // Predicated region
  $region10: #{_lambda_.6} parent=0 // pred_check
    _
  $region11: #{_lambda_.6} parent=0 // pred_check_branch
    %13 = sbr.rel (0) target = $region13
  $region12: #{_lambda_.6} parent=0 // pred_region
    _
  $region13: #{_lambda_.6} parent=0 // pred_fallthru
    _
  %v15 = vld [vmem:[%s0] sm:$0xf]
  %v16 = vld [vmem:[%s0 + $0x4] sm:$0xf]
  %v17 = vld [vmem:[%s0 + $0x8] sm:$0xf]
  %v18 = vld [vmem:[%s0 + $0xc] sm:$0xf]
  %v19 = vld [vmem:[%s0 + $0x10] sm:$0xf]
  %v20 = vld [vmem:[%s0 + $0x14] sm:$0xf]
  %v21 = vld [vmem:[%s0 + $0x18] sm:$0xf]
  %v22 = vld [vmem:[%s0 + $0x1c] sm:$0xf]
  %v23 = vld [vmem:[%s0 + $0x20] sm:$0xf]
  %v24 = vld [vmem:[%s0 + $0x24] sm:$0xf]
  %v25 = vld [vmem:[%s0 + $0x28] sm:$0xf]
  %v26 = vld [vmem:[%s0 + $0x2c] sm:$0xf]
  %v27 = vld [vmem:[%s0 + $0x30] sm:$0xf]
  %v28 = vld [vmem:[%s0 + $0x34] sm:$0xf]
  %v29 = vld [vmem:[%s0 + $0x38] sm:$0xf]
  %v30 = vld [vmem:[%s0 + $0x3c] sm:$0xf]
  %v31 = vld [vmem:[%s1] sm:$0xff]
  %v32 = vld [vmem:[%s1 + $0x8] sm:$0xff]
  %v33 = vld [vmem:[%s1 + $0x10] sm:$0xff]
  %v34 = vld [vmem:[%s1 + $0x18] sm:$0xff]
  %v35 = vld [vmem:[%s2] sm:$0x3]
  %v37 = vperm.slane %v35, 0
  %v38 = vperm.slane %v35, 1
  %v57 = vunpack.c.l.b16 %v15
  %v58 = vunpack.c.l.b16 %v16
  %v59 = vunpack.c.l.b16 %v17
  %v60 = vunpack.c.l.b16 %v18
  %v61 = vunpack.c.l.b16 %v19
  %v62 = vunpack.c.l.b16 %v20
  %v63 = vunpack.c.l.b16 %v21
  %v64 = vunpack.c.l.b16 %v22
  %v65 = vunpack.c.l.b16 %v23
  %v66 = vunpack.c.l.b16 %v24
  %v67 = vunpack.c.l.b16 %v25
  %v68 = vunpack.c.l.b16 %v26
  %v69 = vunpack.c.l.b16 %v27
  %v70 = vunpack.c.l.b16 %v28
  %v71 = vunpack.c.l.b16 %v29
  %v72 = vunpack.c.l.b16 %v30
  %v73 = vpack.c.b16 %v58, %v57
  %v74 = vpack.c.b16 %v60, %v59
  %v75 = vpack.c.b16 %v62, %v61
  %v76 = vpack.c.b16 %v64, %v63
  %v77 = vpack.c.b16 %v66, %v65
  %v78 = vpack.c.b16 %v68, %v67
  %v79 = vpack.c.b16 %v70, %v69
  %v80 = vpack.c.b16 %v72, %v71
  %v85 = vunpack.c.l.b16 %v31
  %v86 = vunpack.c.h.b16 %v31
  %v87 = vunpack.c.l.b16 %v32
  %v88 = vunpack.c.h.b16 %v32
  %v89 = vunpack.c.l.b16 %v33
  %v90 = vunpack.c.h.b16 %v33
  %v91 = vunpack.c.l.b16 %v34
  %v92 = vunpack.c.h.b16 %v34
  %v93 = vpack.c.b16 %v87, %v85
  %v94 = vpack.c.b16 %v88, %v86
  %v95 = vpack.c.b16 %v91, %v89
  %v96 = vpack.c.b16 %v92, %v90
  %vm101 = vcmask 261120
  %v103 = vsel %vm101, %v73, 0
  %v106 = vsel %vm101, %v74, 0
  %v109 = vsel %vm101, %v75, 0
  %v112 = vsel %vm101, %v76, 0
  %v115 = vsel %vm101, %v77, 0
  %v118 = vsel %vm101, %v78, 0
  %v121 = vsel %vm101, %v79, 0
  %v124 = vsel %vm101, %v80, 0
  %126 = vmatpush.bf16.msra.mxu0 0
  %127 = vmatpush.bf16.msra.mxu0 0
  %128 = vmatpush.bf16.msra.mxu0 0
  %129 = vmatpush.bf16.msra.mxu0 0
  %130 = vmatpush.bf16.msra.mxu0 0
  %131 = vmatpush.bf16.msra.mxu0 0
  %132 = vmatpush.bf16.msra.mxu0 %v95
  %133 = vmatpush.bf16.msra.mxu0 %v93
  %134 = vmatmul.bf16.gmra.mxu0 %v103
  %v135 = vpop.f32.mrf.mxu0
  %v136 = vadd.f32 %v37, %v135
  %v137 = vpop.f32.mrf.mxu0
  %v138 = vadd.f32 %v37, %v137
  %139 = vmatmul.bf16.gmra.mxu0 %v106
  %v140 = vpop.f32.mrf.mxu0
  %v141 = vadd.f32 %v37, %v140
  %v142 = vpop.f32.mrf.mxu0
  %v143 = vadd.f32 %v37, %v142
  %144 = vmatmul.bf16.gmra.mxu0 %v109
  %v145 = vpop.f32.mrf.mxu0
  %v146 = vadd.f32 %v37, %v145
  %v147 = vpop.f32.mrf.mxu0
  %v148 = vadd.f32 %v37, %v147
  %149 = vmatmul.bf16.gmra.mxu0 %v112
  %v150 = vpop.f32.mrf.mxu0
  %v151 = vadd.f32 %v37, %v150
  %v152 = vpop.f32.mrf.mxu0
  %v153 = vadd.f32 %v37, %v152
  %154 = vmatmul.bf16.gmra.mxu0 %v115
  %v155 = vpop.f32.mrf.mxu0
  %v156 = vadd.f32 %v37, %v155
  %v157 = vpop.f32.mrf.mxu0
  %v158 = vadd.f32 %v37, %v157
  %159 = vmatmul.bf16.gmra.mxu0 %v118
  %v160 = vpop.f32.mrf.mxu0
  %v161 = vadd.f32 %v37, %v160
  %v162 = vpop.f32.mrf.mxu0
  %v163 = vadd.f32 %v37, %v162
  %164 = vmatmul.bf16.gmra.mxu0 %v121
  %v165 = vpop.f32.mrf.mxu0
  %v166 = vadd.f32 %v37, %v165
  %v167 = vpop.f32.mrf.mxu0
  %v168 = vadd.f32 %v37, %v167
  %169 = vmatmul.bf16.gmra.mxu0 %v124
  %v170 = vpop.f32.mrf.mxu0
  %v171 = vadd.f32 %v37, %v170
  %v172 = vpop.f32.mrf.mxu0
  %v173 = vadd.f32 %v37, %v172
  %174 = vdwg.mxu0
  %175 = vmatpush.bf16.msra.mxu0 0
  %176 = vmatpush.bf16.msra.mxu0 0
  %177 = vmatpush.bf16.msra.mxu0 0
  %178 = vmatpush.bf16.msra.mxu0 0
  %179 = vmatpush.bf16.msra.mxu0 0
  %180 = vmatpush.bf16.msra.mxu0 0
  %181 = vmatpush.bf16.msra.mxu0 %v96
  %182 = vmatpush.bf16.msra.mxu0 %v94
  %183 = vmatmul.bf16.gmra.mxu0 %v103
  %v184 = vpop.f32.mrf.mxu0
  %v185 = vadd.f32 %v38, %v184
  %v186 = vpop.f32.mrf.mxu0
  %v187 = vadd.f32 %v38, %v186
  %188 = vmatmul.bf16.gmra.mxu0 %v106
  %v189 = vpop.f32.mrf.mxu0
  %v190 = vadd.f32 %v38, %v189
  %v191 = vpop.f32.mrf.mxu0
  %v192 = vadd.f32 %v38, %v191
  %193 = vmatmul.bf16.gmra.mxu0 %v109
  %v194 = vpop.f32.mrf.mxu0
  %v195 = vadd.f32 %v38, %v194
  %v196 = vpop.f32.mrf.mxu0
  %v197 = vadd.f32 %v38, %v196
  %198 = vmatmul.bf16.gmra.mxu0 %v112
  %v199 = vpop.f32.mrf.mxu0
  %v200 = vadd.f32 %v38, %v199
  %v201 = vpop.f32.mrf.mxu0
  %v202 = vadd.f32 %v38, %v201
  %203 = vmatmul.bf16.gmra.mxu0 %v115
  %v204 = vpop.f32.mrf.mxu0
  %v205 = vadd.f32 %v38, %v204
  %v206 = vpop.f32.mrf.mxu0
  %v207 = vadd.f32 %v38, %v206
  %208 = vmatmul.bf16.gmra.mxu0 %v118
  %v209 = vpop.f32.mrf.mxu0
  %v210 = vadd.f32 %v38, %v209
  %v211 = vpop.f32.mrf.mxu0
  %v212 = vadd.f32 %v38, %v211
  %213 = vmatmul.bf16.gmra.mxu0 %v121
  %v214 = vpop.f32.mrf.mxu0
  %v215 = vadd.f32 %v38, %v214
  %v216 = vpop.f32.mrf.mxu0
  %v217 = vadd.f32 %v38, %v216
  %218 = vmatmul.bf16.gmra.mxu0 %v124
  %v219 = vpop.f32.mrf.mxu0
  %v220 = vadd.f32 %v38, %v219
  %v221 = vpop.f32.mrf.mxu0
  %v222 = vadd.f32 %v38, %v221
  %223 = vdwg.mxu0
  %v224 = vmax.f32 %v136, 0.0
  %v225 = vmax.f32 %v185, 0.0
  %v226 = vmax.f32 %v138, 0.0
  %v227 = vmax.f32 %v187, 0.0
  %v228 = vmax.f32 %v141, 0.0
  %v229 = vmax.f32 %v190, 0.0
  %v230 = vmax.f32 %v143, 0.0
  %v231 = vmax.f32 %v192, 0.0
  %v232 = vmax.f32 %v146, 0.0
  %v233 = vmax.f32 %v195, 0.0
  %v234 = vmax.f32 %v148, 0.0
  %v235 = vmax.f32 %v197, 0.0
  %v236 = vmax.f32 %v151, 0.0
  %v237 = vmax.f32 %v200, 0.0
  %v238 = vmax.f32 %v153, 0.0
  %v239 = vmax.f32 %v202, 0.0
  %v240 = vmax.f32 %v156, 0.0
  %v241 = vmax.f32 %v205, 0.0
  %v242 = vmax.f32 %v158, 0.0
  %v243 = vmax.f32 %v207, 0.0
  %v244 = vmax.f32 %v161, 0.0
  %v245 = vmax.f32 %v210, 0.0
  %v246 = vmax.f32 %v163, 0.0
  %v247 = vmax.f32 %v212, 0.0
  %v248 = vmax.f32 %v166, 0.0
  %v249 = vmax.f32 %v215, 0.0
  %v250 = vmax.f32 %v168, 0.0
  %v251 = vmax.f32 %v217, 0.0
  %v252 = vmax.f32 %v171, 0.0
  %v253 = vmax.f32 %v220, 0.0
  %v254 = vmax.f32 %v173, 0.0
  %v255 = vmax.f32 %v222, 0.0
  %v256 = vpack.c.bf16 %v225, %v224
  %v257 = vpack.c.bf16 %v227, %v226
  %v258 = vpack.c.bf16 %v229, %v228
  %v259 = vpack.c.bf16 %v231, %v230
  %v260 = vpack.c.bf16 %v233, %v232
  %v261 = vpack.c.bf16 %v235, %v234
  %v262 = vpack.c.bf16 %v237, %v236
  %v263 = vpack.c.bf16 %v239, %v238
  %v264 = vpack.c.bf16 %v241, %v240
  %v265 = vpack.c.bf16 %v243, %v242
  %v266 = vpack.c.bf16 %v245, %v244
  %v267 = vpack.c.bf16 %v247, %v246
  %v268 = vpack.c.bf16 %v249, %v248
  %v269 = vpack.c.bf16 %v251, %v250
  %v270 = vpack.c.bf16 %v253, %v252
  %v271 = vpack.c.bf16 %v255, %v254
  %272 = vst [vmem:[%s3] sm:$0xff] %v256
  %273 = vst [vmem:[%s3 + $0x8] sm:$0xff] %v257
  %274 = vst [vmem:[%s3 + $0x10] sm:$0xff] %v258
  %275 = vst [vmem:[%s3 + $0x18] sm:$0xff] %v259
  %276 = vst [vmem:[%s3 + $0x20] sm:$0xff] %v260
  %277 = vst [vmem:[%s3 + $0x28] sm:$0xff] %v261
  %278 = vst [vmem:[%s3 + $0x30] sm:$0xff] %v262
  %279 = vst [vmem:[%s3 + $0x38] sm:$0xff] %v263
  %280 = vst [vmem:[%s3 + $0x40] sm:$0xff] %v264
  %281 = vst [vmem:[%s3 + $0x48] sm:$0xff] %v265
  %282 = vst [vmem:[%s3 + $0x50] sm:$0xff] %v266
  %283 = vst [vmem:[%s3 + $0x58] sm:$0xff] %v267
  %284 = vst [vmem:[%s3 + $0x60] sm:$0xff] %v268
  %285 = vst [vmem:[%s3 + $0x68] sm:$0xff] %v269
  %286 = vst [vmem:[%s3 + $0x70] sm:$0xff] %v270
  %287 = vst [vmem:[%s3 + $0x78] sm:$0xff] %v271
  // Predicated region
  $region14: #{_lambda_.6} parent=0 // pred_check
    _
  $region15: #{_lambda_.6} parent=0 // pred_check_branch
    %289 = sbr.rel (0) target = $region17
  $region16: #{_lambda_.6} parent=0 // pred_region
    _
  $region17: #{_lambda_.6} parent=0 // pred_fallthru
    _
  // Predicated region
  $region18: #{_lambda_.6} parent=0 // pred_check
    _
  $region19: #{_lambda_.6} parent=0 // pred_check_branch
    %291 = sbr.rel (0) target = $region21
  $region20: #{_lambda_.6} parent=0 // pred_region
    _
  $region21: #{_lambda_.6} parent=0 // pred_fallthru
    _

// kernel: _lambda_.7
$region0: #{_lambda_.7}
  #allocation0 [shape = 'u32[]', space=smem, size = 0x4, offset = 0x4, fixed_abs, tag = 'smem constant byte address 0x4 - core index']
  #allocation1 [shape = 'u32[72,128]{1,0:T(1,128)}', space=vmem, size = 0x9000, scoped, tag = 'internal scratch']
  %s0 = inlined_call_operand.vmem [shape: bf16[2,256,64], index: 0, kind: input, shape index: {}]
  %s1 = inlined_call_operand.vmem [shape: bf16[4,64], index: 1, kind: input, shape index: {}]
  %s2 = inlined_call_operand.vmem [shape: f32[4,1], index: 2, kind: input, shape index: {}]
  %s3 = inlined_call_operand.vmem [shape: f32[2,4,256], index: 3, kind: output, shape index: {}]
  %s4 = sld [smem:[#allocation0]]
  $region45: #{_lambda_.7} parent=0
    _
  %s6 = ssub.s32 1, %s4
  %s7 = scalar_select 0, %s6, %s4
  loop: start=0, step=1, limit=4
  $region2: #{_lambda_.7} parent=0 // loop_pre_header
    _
  $region3: #{_lambda_.7} parent=0 // loop_header
    %s9 = sphi 0, %s13
    %p10 = scmp.ge.s32.totalorder %s9, 4
    %s19 = sphi 0, %s21
    %s22 = sphi 0, %s19
    %s23 = sphi 0, %s22
    %s39 = sphi 0, %s23
    %s43 = sphi 0, %s43
    %s45 = sphi 0, %s43
    %s46 = sphi 0, %s45
    %s60 = sphi 0, %s46
    %s64 = sphi 0, %s64
    %s66 = sphi 0, %s64
    %s67 = sphi 0, %s66
    %s81 = sphi 0, %s67
    %s87 = sphi 0, %s89
    %s90 = sphi 0, %s87
    %s91 = sphi 0, %s90
    %s107 = sphi 0, %s91
  $region4: #{_lambda_.7} parent=0 // loop_header_branch
    %12 = sbr.rel (%p10) target = $region8
  $region5: #{_lambda_.7} parent=0 // loop_body
    %s14 = ssub.s32 %s9, 1
    %s15 = ssub.s32 %s9, 2
    %s16 = sadd.s32 %s9, 1
    %s17 = ssub.s32 %s9, %s16
    %p18 = scmp.eq.s32.totalorder %s17, 0
    %s20 = sadd.s32 %s19, 1
    %s21 = scalar_select %p18, %s19, %s20
    %p24 = pneg %p18
    %p25 = scmp.eq.s32.totalorder %s9, 1
    %p26 = por %p24, %p25
    %p27 = scmp.ne.s32.totalorder %s19, %s22
    %p28 = scmp.eq.s32.totalorder %s9, 0
    %p29 = por %p27, %p28
    %p30 = scmp.ne.s32.totalorder %s19, %s22
    %p31 = scmp.eq.s32.totalorder %s14, 1
    %p32 = por %p30, %p31
    %p33 = scmp.ne.s32.totalorder %s22, %s23
    %p34 = scmp.eq.s32.totalorder %s14, 0
    %p35 = por %p33, %p34
    %p36 = scmp.ne.s32.totalorder %s22, %s23
    %p37 = scmp.eq.s32.totalorder %s15, 1
    %p38 = por %p36, %p37
    %p40 = scmp.ne.s32.totalorder %s23, %s39
    %p41 = scmp.eq.s32.totalorder %s15, 0
    %p42 = por %p40, %p41
    %s44 = sadd.s32 %s43, 1
    %p47 = scmp.eq.s32.totalorder %s9, 1
    %p48 = scmp.ne.s32.totalorder %s43, %s45
    %p49 = scmp.eq.s32.totalorder %s9, 0
    %p50 = por %p48, %p49
    %p51 = scmp.ne.s32.totalorder %s43, %s45
    %p52 = scmp.eq.s32.totalorder %s14, 1
    %p53 = por %p51, %p52
    %p54 = scmp.ne.s32.totalorder %s45, %s46
    %p55 = scmp.eq.s32.totalorder %s14, 0
    %p56 = por %p54, %p55
    %p57 = scmp.ne.s32.totalorder %s45, %s46
    %p58 = scmp.eq.s32.totalorder %s15, 1
    %p59 = por %p57, %p58
    %p61 = scmp.ne.s32.totalorder %s46, %s60
    %p62 = scmp.eq.s32.totalorder %s15, 0
    %p63 = por %p61, %p62
    %s65 = sadd.s32 %s64, 1
    %p68 = scmp.eq.s32.totalorder %s9, 1
    %p69 = scmp.ne.s32.totalorder %s64, %s66
    %p70 = scmp.eq.s32.totalorder %s9, 0
    %p71 = por %p69, %p70
    %p72 = scmp.ne.s32.totalorder %s64, %s66
    %p73 = scmp.eq.s32.totalorder %s14, 1
    %p74 = por %p72, %p73
    %p75 = scmp.ne.s32.totalorder %s66, %s67
    %p76 = scmp.eq.s32.totalorder %s14, 0
    %p77 = por %p75, %p76
    %p78 = scmp.ne.s32.totalorder %s66, %s67
    %p79 = scmp.eq.s32.totalorder %s15, 1
    %p80 = por %p78, %p79
    %p82 = scmp.ne.s32.totalorder %s67, %s81
    %p83 = scmp.eq.s32.totalorder %s15, 0
    %p84 = por %p82, %p83
    %s85 = ssub.s32 %s9, %s16
    %p86 = scmp.eq.s32.totalorder %s85, 0
    %s88 = sadd.s32 %s87, 1
    %s89 = scalar_select %p86, %s87, %s88
    %p92 = pneg %p86
    %p93 = scmp.eq.s32.totalorder %s9, 1
    %p94 = por %p92, %p93
    %p95 = scmp.ne.s32.totalorder %s87, %s90
    %p96 = scmp.eq.s32.totalorder %s9, 0
    %p97 = por %p95, %p96
    %p98 = scmp.ne.s32.totalorder %s87, %s90
    %p99 = scmp.eq.s32.totalorder %s14, 1
    %p100 = por %p98, %p99
    %p101 = scmp.ne.s32.totalorder %s90, %s91
    %p102 = scmp.eq.s32.totalorder %s14, 0
    %p103 = por %p101, %p102
    %p104 = scmp.ne.s32.totalorder %s90, %s91
    %p105 = scmp.eq.s32.totalorder %s15, 1
    %p106 = por %p104, %p105
    %p108 = scmp.ne.s32.totalorder %s91, %s107
    %p109 = scmp.eq.s32.totalorder %s15, 0
    %p110 = por %p108, %p109
    %p111 = scmp.le.s32.totalorder 1, %s9
    %p112 = scmp.lt.s32.totalorder %s9, 3
    %p113 = pnand %p111, %p112
    %p114 = pneg %p113
    // Predicated region
    $region9: #{_lambda_.7} parent=5 // pred_check
      _
    $region10: #{_lambda_.7} parent=5 // pred_check_branch
      %116 = sbr.rel (%p113) target = $region12
    $region11: #{_lambda_.7} parent=5 // pred_region
      %s117 = ssub.s32 %s9, 1
      // Predicated region
      $region13: #{_lambda_.7} parent=11 // pred_check
        %p118 = pneg %p56
      $region14: #{_lambda_.7} parent=11 // pred_check_branch
        %120 = sbr.rel (%p118) target = $region16
      $region15: #{_lambda_.7} parent=11 // pred_region
        _
      $region16: #{_lambda_.7} parent=11 // pred_fallthru
        _
      // Predicated region
      $region17: #{_lambda_.7} parent=11 // pred_check
        %p121 = pneg %p77
      $region18: #{_lambda_.7} parent=11 // pred_check_branch
        %123 = sbr.rel (%p121) target = $region20
      $region19: #{_lambda_.7} parent=11 // pred_region
        _
      $region20: #{_lambda_.7} parent=11 // pred_fallthru
        _
    $region12: #{_lambda_.7} parent=5 // pred_fallthru
      _
    %p124 = scmp.lt.s32.totalorder %s9, 2
    // Predicated region
    $region21: #{_lambda_.7} parent=5 // pred_check
      %p125 = pneg %p124
    $region22: #{_lambda_.7} parent=5 // pred_check_branch
      %127 = sbr.rel (%p125) target = $region24
    $region23: #{_lambda_.7} parent=5 // pred_region
      // Predicated region
      $region25: #{_lambda_.7} parent=23 // pred_check
        %p128 = pneg %p29
      $region26: #{_lambda_.7} parent=23 // pred_check_branch
        %130 = sbr.rel (%p128) target = $region28
      $region27: #{_lambda_.7} parent=23 // pred_region
        %p131 = scmp.lt.s32.totalorder %s9, 1
        %s132 = scalar_select %p131, %s9, 1
        %s133 = smul.addr %s132, 32
        %s134 = smul.addr %s133, 4
        %s135 = scalar_lea.vmem %s0, %s134
      $region28: #{_lambda_.7} parent=23 // pred_fallthru
        _
    $region24: #{_lambda_.7} parent=5 // pred_fallthru
      _
    %p136 = scmp.le.s32.totalorder 1, %s9
    %p137 = scmp.lt.s32.totalorder %s9, 3
    %p138 = pnand %p136, %p137
    %p139 = pneg %p138
    // Predicated region
    $region29: #{_lambda_.7} parent=5 // pred_check
      _
    $region30: #{_lambda_.7} parent=5 // pred_check_branch
      %141 = sbr.rel (%p138) target = $region32
    $region31: #{_lambda_.7} parent=5 // pred_region
      %s142 = ssub.s32 %s9, 1
      %p143 = scmp.lt.s32.totalorder %s14, 1
      %s144 = scalar_select %p143, %s14, 1
      %s145 = smul.addr %s144, 32
      %s146 = smul.addr %s145, 4
      %s147 = scalar_lea.vmem %s0, %s146
      %p148 = pneg %p35
      %p149 = pneg %p32
      %p150 = pneg %p56
      %p151 = pneg %p53
      %p152 = pneg %p77
      %p153 = pneg %p74
      %p154 = pneg %p103
      %p155 = pneg %p100
      %p156 = scmp.lt.s32.totalorder %s14, 1
      %s157 = scalar_select %p156, %s14, 1
      %s158 = smul.addr %s157, 2
      %s159 = smul.addr %s158, 4
      %s160 = scalar_lea.vmem %s3, %s159
      %p161 = scmp.lt.s32.totalorder %s14, 1
      %s162 = scalar_select %p161, %s14, 1
      %s163 = smul.addr %s162, 32
      %s164 = smul.addr %s163, 4
      %s165 = scalar_lea.vmem %s0, %s164
      %p166 = scmp.lt.s32.totalorder %s14, 1
      %s167 = scalar_select %p166, %s14, 1
      %s168 = smul.addr %s167, 2
      %s169 = smul.addr %s168, 4
      %s170 = scalar_lea.vmem %s3, %s169
      %v171 = vld [vmem:[%s1] sm:$0x3]
      %v172 = vld [vmem:[%s165] sm:$0xf]
      %v173 = vld [vmem:[%s165 + $0x4] sm:$0xf]
      %v174 = vld [vmem:[%s165 + $0x8] sm:$0xf]
      %v175 = vld [vmem:[%s165 + $0xc] sm:$0xf]
      %v176 = vld [vmem:[%s165 + $0x10] sm:$0xf]
      %v177 = vld [vmem:[%s165 + $0x14] sm:$0xf]
      %v178 = vld [vmem:[%s165 + $0x18] sm:$0xf]
      %v179 = vld [vmem:[%s165 + $0x1c] sm:$0xf]
      %v180 = vld [vmem:[%s165 + $0x20] sm:$0xf]
      %v181 = vld [vmem:[%s165 + $0x24] sm:$0xf]
      %v182 = vld [vmem:[%s165 + $0x28] sm:$0xf]
      %v183 = vld [vmem:[%s165 + $0x2c] sm:$0xf]
      %v184 = vld [vmem:[%s165 + $0x30] sm:$0xf]
      %v185 = vld [vmem:[%s165 + $0x34] sm:$0xf]
      %v186 = vld [vmem:[%s165 + $0x38] sm:$0xf]
      %v187 = vld [vmem:[%s165 + $0x3c] sm:$0xf]
      %v188 = vld [vmem:[%s165 + $0x40] sm:$0xf]
      %v189 = vld [vmem:[%s165 + $0x44] sm:$0xf]
      %v190 = vld [vmem:[%s165 + $0x48] sm:$0xf]
      %v191 = vld [vmem:[%s165 + $0x4c] sm:$0xf]
      %v192 = vld [vmem:[%s165 + $0x50] sm:$0xf]
      %v193 = vld [vmem:[%s165 + $0x54] sm:$0xf]
      %v194 = vld [vmem:[%s165 + $0x58] sm:$0xf]
      %v195 = vld [vmem:[%s165 + $0x5c] sm:$0xf]
      %v196 = vld [vmem:[%s165 + $0x60] sm:$0xf]
      %v197 = vld [vmem:[%s165 + $0x64] sm:$0xf]
      %v198 = vld [vmem:[%s165 + $0x68] sm:$0xf]
      %v199 = vld [vmem:[%s165 + $0x6c] sm:$0xf]
      %v200 = vld [vmem:[%s165 + $0x70] sm:$0xf]
      %v201 = vld [vmem:[%s165 + $0x74] sm:$0xf]
      %v202 = vld [vmem:[%s165 + $0x78] sm:$0xf]
      %v203 = vld [vmem:[%s165 + $0x7c] sm:$0xf]
      %v204 = vld [vmem:[%s2] sm:$0xf]
      %206 = vset.pattern.permute.xlu0 0
      %207 = vperm.xlu0 %206, %v204
      %v208 = vpop.permute.xlu0 %207
      %v242 = vunpack.c.l.b16 %v172
      %v243 = vunpack.c.l.b16 %v173
      %v244 = vunpack.c.l.b16 %v174
      %v245 = vunpack.c.l.b16 %v175
      %v246 = vunpack.c.l.b16 %v176
      %v247 = vunpack.c.l.b16 %v177
      %v248 = vunpack.c.l.b16 %v178
      %v249 = vunpack.c.l.b16 %v179
      %v250 = vunpack.c.l.b16 %v180
      %v251 = vunpack.c.l.b16 %v181
      %v252 = vunpack.c.l.b16 %v182
      %v253 = vunpack.c.l.b16 %v183
      %v254 = vunpack.c.l.b16 %v184
      %v255 = vunpack.c.l.b16 %v185
      %v256 = vunpack.c.l.b16 %v186
      %v257 = vunpack.c.l.b16 %v187
      %v258 = vunpack.c.l.b16 %v188
      %v259 = vunpack.c.l.b16 %v189
      %v260 = vunpack.c.l.b16 %v190
      %v261 = vunpack.c.l.b16 %v191
      %v262 = vunpack.c.l.b16 %v192
      %v263 = vunpack.c.l.b16 %v193
      %v264 = vunpack.c.l.b16 %v194
      %v265 = vunpack.c.l.b16 %v195
      %v266 = vunpack.c.l.b16 %v196
      %v267 = vunpack.c.l.b16 %v197
      %v268 = vunpack.c.l.b16 %v198
      %v269 = vunpack.c.l.b16 %v199
      %v270 = vunpack.c.l.b16 %v200
      %v271 = vunpack.c.l.b16 %v201
      %v272 = vunpack.c.l.b16 %v202
      %v273 = vunpack.c.l.b16 %v203
      %v274 = vpack.c.b16 %v243, %v242
      %v275 = vpack.c.b16 %v245, %v244
      %v276 = vpack.c.b16 %v247, %v246
      %v277 = vpack.c.b16 %v249, %v248
      %v278 = vpack.c.b16 %v251, %v250
      %v279 = vpack.c.b16 %v253, %v252
      %v280 = vpack.c.b16 %v255, %v254
      %v281 = vpack.c.b16 %v257, %v256
      %v282 = vpack.c.b16 %v259, %v258
      %v283 = vpack.c.b16 %v261, %v260
      %v284 = vpack.c.b16 %v263, %v262
      %v285 = vpack.c.b16 %v265, %v264
      %v286 = vpack.c.b16 %v267, %v266
      %v287 = vpack.c.b16 %v269, %v268
      %v288 = vpack.c.b16 %v271, %v270
      %v289 = vpack.c.b16 %v273, %v272
      %vm290 = vcmask 523264
      %v292 = vsel %vm290, %v171, 0
      %v295 = vsel %vm290, %v274, 0
      %v298 = vsel %vm290, %v275, 0
      %v301 = vsel %vm290, %v276, 0
      %v304 = vsel %vm290, %v277, 0
      %v307 = vsel %vm290, %v278, 0
      %v310 = vsel %vm290, %v279, 0
      %v313 = vsel %vm290, %v280, 0
      %v316 = vsel %vm290, %v281, 0
      %v319 = vsel %vm290, %v282, 0
      %v322 = vsel %vm290, %v283, 0
      %v325 = vsel %vm290, %v284, 0
      %v328 = vsel %vm290, %v285, 0
      %v331 = vsel %vm290, %v286, 0
      %v334 = vsel %vm290, %v287, 0
      %v337 = vsel %vm290, %v288, 0
      %v340 = vsel %vm290, %v289, 0
      %342 = vmatpush.bf16.xpose.msra.mxu0 %v316
      %343 = vmatpush.bf16.xpose.msra.mxu0 %v313
      %344 = vmatpush.bf16.xpose.msra.mxu0 %v310
      %345 = vmatpush.bf16.xpose.msra.mxu0 %v307
      %346 = vmatpush.bf16.xpose.msra.mxu0 %v304
      %347 = vmatpush.bf16.xpose.msra.mxu0 %v301
      %348 = vmatpush.bf16.xpose.msra.mxu0 %v298
      %349 = vmatpush.bf16.xpose.msra.mxu0 %v295
      %350 = vmatmul.bf16.gmra.mxu0 %v292
      %v351 = vpop.f32.mrf.mxu0
      %v352 = vadd.f32 %v208, %v351
      %v353 = vpop.f32.mrf.mxu0
      %354 = vdwg.mxu0
      %355 = vmatpush.bf16.xpose.msra.mxu0 %v340
      %356 = vmatpush.bf16.xpose.msra.mxu0 %v337
      %357 = vmatpush.bf16.xpose.msra.mxu0 %v334
      %358 = vmatpush.bf16.xpose.msra.mxu0 %v331
      %359 = vmatpush.bf16.xpose.msra.mxu0 %v328
      %360 = vmatpush.bf16.xpose.msra.mxu0 %v325
      %361 = vmatpush.bf16.xpose.msra.mxu0 %v322
      %362 = vmatpush.bf16.xpose.msra.mxu0 %v319
      %363 = vmatmul.bf16.gmra.mxu0 %v292
      %v364 = vpop.f32.mrf.mxu0
      %v365 = vadd.f32 %v208, %v364
      %v366 = vpop.f32.mrf.mxu0
      %367 = vdwg.mxu0
      %v368 = vxor.u32 %v352, 2147483648
      %v369 = vxor.u32 %v365, 2147483648
      %v370 = vmul.f32 %v368, 1.442695
      %v371 = vpow.pop %v370
      %v372 = vmul.f32 %v369, 1.442695
      %v373 = vpow.pop %v372
      %v374 = vadd.f32 %v371, 1.0
      %v375 = vadd.f32 %v373, 1.0
      %v376 = vrcp.pop %v374
      %v377 = vmul.f32 %v374, %v376
      %v378 = vsub.f32 1.0, %v377
      %v379 = vmul.f32 %v376, %v378
      %v380 = vadd.f32 %v376, %v379
      %vm381 = vweird.f32 %v374
      %vm382 = vweird.f32 %v376
      %vm383 = vmor %vm381, %vm382
      %v384 = vsel %vm383, %v376, %v380
      %v385 = vand.u32 2147483647, %v374
      %vm386 = vcmp.eq.f32.partialorder %v385, 8.507059e+37
      %v387 = vand.u32 %v374, 2147483648
      %v388 = vor.u32 1.1754944e-38, %v387
      %v389 = vsel %vm386, %v388, %v384
      %v390 = vmul.f32 1.0, %v389
      %v391 = vrcp.pop %v375
      %v392 = vmul.f32 %v375, %v391
      %v393 = vsub.f32 1.0, %v392
      %v394 = vmul.f32 %v391, %v393
      %v395 = vadd.f32 %v391, %v394
      %vm396 = vweird.f32 %v375
      %vm397 = vweird.f32 %v391
      %vm398 = vmor %vm396, %vm397
      %v399 = vsel %vm398, %v391, %v395
      %v400 = vand.u32 2147483647, %v375
      %vm401 = vcmp.eq.f32.partialorder %v400, 8.507059e+37
      %v402 = vand.u32 %v375, 2147483648
      %v403 = vor.u32 1.1754944e-38, %v402
      %v404 = vsel %vm401, %v403, %v399
      %v405 = vmul.f32 1.0, %v404
      %v408 = vrot.slane %v405, 4
      %vm409 = vcmask 1043456
      %v410 = vsel %vm409, %v390, %v408
      %412 = vst [vmem:[%s170] sm:$0xff] %v410
      %p413 = scmp.lt.s32.totalorder %s14, 1
      %s414 = scalar_select %p413, %s14, 1
      %s415 = smul.addr %s414, 2
      %s416 = smul.addr %s415, 4
      %s417 = scalar_lea.vmem %s3, %s416
      // Predicated region
      $region33: #{_lambda_.7} parent=31 // pred_check
        %p418 = pneg %p100
      $region34: #{_lambda_.7} parent=31 // pred_check_branch
        %420 = sbr.rel (%p418) target = $region36
      $region35: #{_lambda_.7} parent=31 // pred_region
        _
      $region36: #{_lambda_.7} parent=31 // pred_fallthru
        _
    $region32: #{_lambda_.7} parent=5 // pred_fallthru
      _
    %p421 = scmp.le.s32.totalorder 2, %s9
    // Predicated region
    $region37: #{_lambda_.7} parent=5 // pred_check
      %p422 = pneg %p421
    $region38: #{_lambda_.7} parent=5 // pred_check_branch
      %424 = sbr.rel (%p422) target = $region40
    $region39: #{_lambda_.7} parent=5 // pred_region
      %s425 = ssub.s32 %s9, 2
      // Predicated region
      $region41: #{_lambda_.7} parent=39 // pred_check
        %p426 = pneg %p106
      $region42: #{_lambda_.7} parent=39 // pred_check_branch
        %428 = sbr.rel (%p426) target = $region44
      $region43: #{_lambda_.7} parent=39 // pred_region
        %p429 = scmp.lt.s32.totalorder %s15, 1
        %s430 = scalar_select %p429, %s15, 1
        %s431 = smul.addr %s430, 2
        %s432 = smul.addr %s431, 4
        %s433 = scalar_lea.vmem %s3, %s432
      $region44: #{_lambda_.7} parent=39 // pred_fallthru
        _
    $region40: #{_lambda_.7} parent=5 // pred_fallthru
      _
  $region6: #{_lambda_.7} parent=0 // loop_footer
    %s13 = sadd.s32 1, %s9
  $region7: #{_lambda_.7} parent=0 // loop_footer_branch
    %8 = sbr.rel target = $region3
  $region8: #{_lambda_.7} parent=0 // loop_exit
    _

</llo_original>
